<compile_context>
chip_gen: v7x
topology: tpu7x:2x2x1
jax: 0.10.0
libtpu: 0.0.40
codegen_flags: <defaults>
</compile_context>

<pallas_src>
import functools

import jax
import jax.numpy as jnp
import numpy as np
from jax.experimental import pallas as pl
from jax.experimental.pallas import tpu as pltpu


def fused_conv2_relu_kernel(x_ref, w1_ref, b1_ref, w2_ref, b2_ref, o_ref,
                            xp_ref, hp_ref):
    """Fused conv1+ReLU -> conv2+ReLU for one batch element.

    Packed-lane layout: activation rows are H on the sublane axis and
    (width * channels) on the lane axis.

    x_ref : (1, H, W*Cin)        packed input
    w1_ref: (3, W*Cin,  W*Cmid)  block-Toeplitz weights (kw taps + W-padding folded in)
    b1_ref: (1, W*Cmid)          bias tiled over width
    w2_ref: (3, W*Cmid, W*Cout)
    b2_ref: (1, W*Cout)
    o_ref : (1, H, W*Cout)       lane-dense output (16, 128)
    xp_ref: VMEM (H+2, W*Cin)    H-padded input scratch
    hp_ref: VMEM (H+2, W*Cmid)   H-padded intermediate scratch (never hits HBM)
    """
    H = o_ref.shape[1]

    # ---- layer 1: pad along H in VMEM (width padding is inside the weights) ----
    xp_ref[...] = jnp.zeros_like(xp_ref)
    xp_ref[1:H + 1, :] = x_ref[0]

    acc1 = jnp.zeros((H, w1_ref.shape[2]), jnp.float32)
    for kh in range(3):                       # 3 matmuls, K = W*Cin (deep-K)
        acc1 += jnp.dot(xp_ref[kh:kh + H, :], w1_ref[kh],
                        preferred_element_type=jnp.float32)
    h = jnp.maximum(acc1 + b1_ref[...], 0.0)  # (H, W*Cmid) = (16, 128)

    # ---- layer 2: intermediate stays in VMEM ----
    hp_ref[...] = jnp.zeros_like(hp_ref)
    hp_ref[1:H + 1, :] = h

    acc2 = jnp.zeros((H, w2_ref.shape[2]), jnp.float32)
    for kh in range(3):                       # 3 matmuls, K = W*Cmid = 128
        acc2 += jnp.dot(hp_ref[kh:kh + H, :], w2_ref[kh],
                        preferred_element_type=jnp.float32)
    o_ref[0, :, :] = jnp.maximum(acc2 + b2_ref[...], 0.0).astype(o_ref.dtype)


def _make_width_toeplitz(w, width):
    """Fold the kw taps and 'SAME' width padding of a 3x3 conv into per-kh
    block-Toeplitz matmul weights: (3, 3, Cin, Cout) -> (3, width*Cin, width*Cout).

    t[kh, s*Cin+ci, j*Cout+co] = w[kh, kw, ci, co]  where s = j + kw - 1 (if in range).
    """
    KH, KW, Cin, Cout = w.shape
    t = jnp.zeros((KH, width * Cin, width * Cout), w.dtype)
    for kw in range(KW):
        # M[s, j] = 1 iff input column s feeds output column j through tap kw.
        M = jnp.eye(width, width, k=1 - kw, dtype=w.dtype)
        blk = jnp.einsum('sj,hio->hsijo', M, w[:, kw])
        t = t + blk.reshape(KH, width * Cin, width * Cout)
    return t


def fused_backbone_features(x_packed, w1t, b1t, w2t, b2t, H, W, Cin, Cmid, Cout):
    """x_packed: (N, H, W*Cin) f32; returns packed features (N, H, W*Cout)."""
    N = x_packed.shape[0]
    return pl.pallas_call(
        fused_conv2_relu_kernel,
        out_shape=jax.ShapeDtypeStruct((N, H, W * Cout), jnp.float32),
        grid_spec=pltpu.PrefetchScalarGridSpec(
            num_scalar_prefetch=0,
            grid=(N,),
            in_specs=[
                pl.BlockSpec((1, H, W * Cin), lambda n: (n, 0, 0)),
                pl.BlockSpec((3, W * Cin, W * Cmid), lambda n: (0, 0, 0)),
                pl.BlockSpec((1, W * Cmid), lambda n: (0, 0)),
                pl.BlockSpec((3, W * Cmid, W * Cout), lambda n: (0, 0, 0)),
                pl.BlockSpec((1, W * Cout), lambda n: (0, 0)),
            ],
            out_specs=pl.BlockSpec((1, H, W * Cout), lambda n: (n, 0, 0)),
            scratch_shapes=[
                pltpu.VMEM((H + 2, W * Cin), jnp.float32),
                pltpu.VMEM((H + 2, W * Cmid), jnp.float32),
            ],
        ),
        compiler_params=pltpu.CompilerParams(
            dimension_semantics=("parallel",)),   # v7x: one image per TensorCore
    )(x_packed, w1t, b1t, w2t, b2t)


def init_backbone_params(key, c_in=4, c_hidden=8):
    """Deterministic synthetic backbone parameters (2 conv layers, HWIO)."""
    k1, k2, k3, k4 = jax.random.split(key, 4)
    w1 = jax.random.normal(k1, (3, 3, c_in, c_hidden), jnp.float32) * 0.1
    b1 = jax.random.normal(k2, (c_hidden,), jnp.float32) * 0.1
    w2 = jax.random.normal(k3, (3, 3, c_hidden, c_hidden), jnp.float32) * 0.1
    b2 = jax.random.normal(k4, (c_hidden,), jnp.float32) * 0.1
    return {"w1": w1, "b1": b1, "w2": w2, "b2": b2}


@functools.partial(jax.jit, static_argnames=())
def model_wrapper_nohead_forward(params, x_nchw):
    """Equivalent of ModelWrapper_nohead.forward: `_, x = backbone(x); return x`.

    Input/output are NCHW (PyTorch convention); internally a lane-packed
    (N, H, W*C) layout is used so the Pallas output is lane-dense (16, 128).
    The first backbone output (pooled logits head) is discarded by the wrapper,
    so it is never computed.
    """
    N, Cin, H, W = x_nchw.shape
    w1, b1, w2, b2 = params["w1"], params["b1"], params["w2"], params["b2"]
    Cmid, Cout = w1.shape[-1], w2.shape[-1]

    # Boundary glue (tiny): NCHW -> packed (N, H, W*Cin).
    x_packed = jnp.transpose(x_nchw, (0, 2, 3, 1)).reshape(N, H, W * Cin)

    # Fold kw taps + width padding into block-Toeplitz weights; tile biases over W.
    w1t = _make_width_toeplitz(w1, W)                 # (3, W*Cin,  W*Cmid)
    w2t = _make_width_toeplitz(w2, W)                 # (3, W*Cmid, W*Cout)
    b1t = jnp.tile(b1, W).reshape(1, W * Cmid)
    b2t = jnp.tile(b2, W).reshape(1, W * Cout)

    feat_packed = fused_backbone_features(x_packed, w1t, b1t, w2t, b2t,
                                          H, W, Cin, Cmid, Cout)
    feat = feat_packed.reshape(N, H, W, Cout)
    return jnp.transpose(feat, (0, 3, 1, 2))          # packed -> NCHW


def _reference_forward(params, x_nchw):
    """Pure-JAX reference (lax conv) for a correctness check."""
    def conv(x, w, b):
        w_oihw = jnp.transpose(w, (3, 2, 0, 1))       # HWIO -> OIHW
        y = jax.lax.conv_general_dilated(
            x, w_oihw, window_strides=(1, 1), padding="SAME",
            dimension_numbers=("NCHW", "OIHW", "NCHW"),
            precision=jax.lax.Precision.HIGHEST)
        return jnp.maximum(y + b[None, :, None, None], 0.0)
    h = conv(x_nchw, params["w1"], params["b1"])
    return conv(h, params["w2"], params["b2"])


if __name__ == "__main__":
    key = jax.random.PRNGKey(0)
    kp, kx = jax.random.split(key)

    N, C_IN, H, W = 2, 4, 16, 16
    C_HIDDEN = 8

    params = init_backbone_params(kp, c_in=C_IN, c_hidden=C_HIDDEN)
    x = jax.random.normal(kx, (N, C_IN, H, W), jnp.float32)

    out = model_wrapper_nohead_forward(params, x)
    out = jax.block_until_ready(out)

    ref = _reference_forward(params, x)
    np.testing.assert_allclose(np.asarray(out), np.asarray(ref),
                               rtol=1e-4, atol=1e-4)

    assert out.shape == (N, C_HIDDEN, H, W)
    print("KERNEL_OK")
</pallas_src>

<mosaic_0001>
module attributes {stable_mosaic.version = 11 : i64} {
  func.func @fused_conv2_relu_kernel(%arg0: i32, %arg1: memref<1x16x64xf32, #tpu.memory_space<vmem>>, %arg2: memref<3x64x128xf32, #tpu.memory_space<vmem>>, %arg3: memref<1x128xf32, #tpu.memory_space<vmem>>, %arg4: memref<3x128x128xf32, #tpu.memory_space<vmem>>, %arg5: memref<1x128xf32, #tpu.memory_space<vmem>>, %arg6: memref<1x16x128xf32, #tpu.memory_space<vmem>>, %arg7: memref<18x64xf32, #tpu.memory_space<vmem>>, %arg8: memref<18x128xf32, #tpu.memory_space<vmem>>) attributes {dimension_semantics = [#tpu.dimension_semantics<parallel>], iteration_bounds = array<i64: 2>, scalar_prefetch = 0 : i64, scratch_operands = 2 : i64, tpu.core_type = #tpu.core_type<tc>, window_params = [{transform_indices = @transform_0, window_bounds = array<i64: 1, 16, 64>}, {pipeline_mode = #tpu.pipeline_mode<synchronous>, transform_indices = @transform_1, window_bounds = array<i64: 3, 64, 128>}, {pipeline_mode = #tpu.pipeline_mode<synchronous>, transform_indices = @transform_2, window_bounds = array<i64: 1, 128>}, {pipeline_mode = #tpu.pipeline_mode<synchronous>, transform_indices = @transform_3, window_bounds = array<i64: 3, 128, 128>}, {pipeline_mode = #tpu.pipeline_mode<synchronous>, transform_indices = @transform_4, window_bounds = array<i64: 1, 128>}, {transform_indices = @transform_5, window_bounds = array<i64: 1, 16, 128>}]} {
    %cst = arith.constant 0.000000e+00 : f32
    %0 = vector.broadcast %cst : f32 to vector<18x64xf32>
    %c0 = arith.constant 0 : index
    %c0_0 = arith.constant 0 : index
    %1 = vector.load %arg7[%c0, %c0_0] : memref<18x64xf32, #tpu.memory_space<vmem>>, vector<18x64xf32>
    tpu.vector_store %arg7[%c0, %c0_0], %0 {strides = array<i32>} : memref<18x64xf32, #tpu.memory_space<vmem>>, vector<18x64xf32>,
    %c0_1 = arith.constant 0 : index
    %c0_2 = arith.constant 0 : index
    %c0_3 = arith.constant 0 : index
    %2 = vector.load %arg1[%c0_1, %c0_2, %c0_3] : memref<1x16x64xf32, #tpu.memory_space<vmem>>, vector<1x16x64xf32>
    %3 = vector.shape_cast %2 : vector<1x16x64xf32> to vector<16x64xf32>
    %c1 = arith.constant 1 : index
    %c0_4 = arith.constant 0 : index
    %4 = vector.load %arg7[%c1, %c0_4] : memref<18x64xf32, #tpu.memory_space<vmem>>, vector<16x64xf32>
    tpu.vector_store %arg7[%c1, %c0_4], %3 {strides = array<i32>} : memref<18x64xf32, #tpu.memory_space<vmem>>, vector<16x64xf32>,
    %cst_5 = arith.constant 0.000000e+00 : f32
    %5 = vector.broadcast %cst_5 : f32 to vector<16x128xf32>
    %c0_6 = arith.constant 0 : index
    %c0_7 = arith.constant 0 : index
    %6 = vector.load %arg7[%c0_6, %c0_7] : memref<18x64xf32, #tpu.memory_space<vmem>>, vector<16x64xf32>
    %c0_8 = arith.constant 0 : index
    %c0_9 = arith.constant 0 : index
    %c0_10 = arith.constant 0 : index
    %7 = vector.load %arg2[%c0_8, %c0_9, %c0_10] : memref<3x64x128xf32, #tpu.memory_space<vmem>>, vector<1x64x128xf32>
    %8 = vector.shape_cast %7 : vector<1x64x128xf32> to vector<64x128xf32>
    %cst_11 = arith.constant dense<0.000000e+00> : vector<16x128xf32>
    %9 = tpu.matmul %6, %8, %cst_11 {dimension_numbers = #tpu.dot_dimension_numbers<[1], [0], [0], [1], [0, 0, 1, 1], [], []>} : vector<16x64xf32>, vector<64x128xf32>, vector<16x128xf32> -> vector<16x128xf32>
    %10 = arith.addf %5, %9 : vector<16x128xf32>
    %c1_12 = arith.constant 1 : index
    %c0_13 = arith.constant 0 : index
    %11 = vector.load %arg7[%c1_12, %c0_13] : memref<18x64xf32, #tpu.memory_space<vmem>>, vector<16x64xf32>
    %c1_14 = arith.constant 1 : index
    %c0_15 = arith.constant 0 : index
    %c0_16 = arith.constant 0 : index
    %12 = vector.load %arg2[%c1_14, %c0_15, %c0_16] : memref<3x64x128xf32, #tpu.memory_space<vmem>>, vector<1x64x128xf32>
    %13 = vector.shape_cast %12 : vector<1x64x128xf32> to vector<64x128xf32>
    %cst_17 = arith.constant dense<0.000000e+00> : vector<16x128xf32>
    %14 = tpu.matmul %11, %13, %cst_17 {dimension_numbers = #tpu.dot_dimension_numbers<[1], [0], [0], [1], [0, 0, 1, 1], [], []>} : vector<16x64xf32>, vector<64x128xf32>, vector<16x128xf32> -> vector<16x128xf32>
    %15 = arith.addf %10, %14 : vector<16x128xf32>
    %c2 = arith.constant 2 : index
    %c0_18 = arith.constant 0 : index
    %16 = vector.load %arg7[%c2, %c0_18] : memref<18x64xf32, #tpu.memory_space<vmem>>, vector<16x64xf32>
    %c2_19 = arith.constant 2 : index
    %c0_20 = arith.constant 0 : index
    %c0_21 = arith.constant 0 : index
    %17 = vector.load %arg2[%c2_19, %c0_20, %c0_21] : memref<3x64x128xf32, #tpu.memory_space<vmem>>, vector<1x64x128xf32>
    %18 = vector.shape_cast %17 : vector<1x64x128xf32> to vector<64x128xf32>
    %cst_22 = arith.constant dense<0.000000e+00> : vector<16x128xf32>
    %19 = tpu.matmul %16, %18, %cst_22 {dimension_numbers = #tpu.dot_dimension_numbers<[1], [0], [0], [1], [0, 0, 1, 1], [], []>} : vector<16x64xf32>, vector<64x128xf32>, vector<16x128xf32> -> vector<16x128xf32>
    %20 = arith.addf %15, %19 : vector<16x128xf32>
    %c0_23 = arith.constant 0 : index
    %c0_24 = arith.constant 0 : index
    %21 = vector.load %arg3[%c0_23, %c0_24] : memref<1x128xf32, #tpu.memory_space<vmem>>, vector<1x128xf32>
    %22 = vector.broadcast %21 : vector<1x128xf32> to vector<16x128xf32>
    %23 = arith.addf %20, %22 : vector<16x128xf32>
    %cst_25 = arith.constant 0.000000e+00 : f32
    %24 = vector.broadcast %cst_25 : f32 to vector<16x128xf32>
    %25 = arith.maximumf %23, %24 : vector<16x128xf32>
    %cst_26 = arith.constant 0.000000e+00 : f32
    %26 = vector.broadcast %cst_26 : f32 to vector<18x128xf32>
    %c0_27 = arith.constant 0 : index
    %c0_28 = arith.constant 0 : index
    %27 = vector.load %arg8[%c0_27, %c0_28] : memref<18x128xf32, #tpu.memory_space<vmem>>, vector<18x128xf32>
    tpu.vector_store %arg8[%c0_27, %c0_28], %26 {strides = array<i32>} : memref<18x128xf32, #tpu.memory_space<vmem>>, vector<18x128xf32>,
    %c1_29 = arith.constant 1 : index
    %c0_30 = arith.constant 0 : index
    %28 = vector.load %arg8[%c1_29, %c0_30] : memref<18x128xf32, #tpu.memory_space<vmem>>, vector<16x128xf32>
    tpu.vector_store %arg8[%c1_29, %c0_30], %25 {strides = array<i32>} : memref<18x128xf32, #tpu.memory_space<vmem>>, vector<16x128xf32>,
    %cst_31 = arith.constant 0.000000e+00 : f32
    %29 = vector.broadcast %cst_31 : f32 to vector<16x128xf32>
    %c0_32 = arith.constant 0 : index
    %c0_33 = arith.constant 0 : index
    %30 = vector.load %arg8[%c0_32, %c0_33] : memref<18x128xf32, #tpu.memory_space<vmem>>, vector<16x128xf32>
    %c0_34 = arith.constant 0 : index
    %c0_35 = arith.constant 0 : index
    %c0_36 = arith.constant 0 : index
    %31 = vector.load %arg4[%c0_34, %c0_35, %c0_36] : memref<3x128x128xf32, #tpu.memory_space<vmem>>, vector<1x128x128xf32>
    %32 = vector.shape_cast %31 : vector<1x128x128xf32> to vector<128x128xf32>
    %cst_37 = arith.constant dense<0.000000e+00> : vector<16x128xf32>
    %33 = tpu.matmul %30, %32, %cst_37 {dimension_numbers = #tpu.dot_dimension_numbers<[1], [0], [0], [1], [0, 0, 1, 1], [], []>} : vector<16x128xf32>, vector<128x128xf32>, vector<16x128xf32> -> vector<16x128xf32>
    %34 = arith.addf %29, %33 : vector<16x128xf32>
    %c1_38 = arith.constant 1 : index
    %c0_39 = arith.constant 0 : index
    %35 = vector.load %arg8[%c1_38, %c0_39] : memref<18x128xf32, #tpu.memory_space<vmem>>, vector<16x128xf32>
    %c1_40 = arith.constant 1 : index
    %c0_41 = arith.constant 0 : index
    %c0_42 = arith.constant 0 : index
    %36 = vector.load %arg4[%c1_40, %c0_41, %c0_42] : memref<3x128x128xf32, #tpu.memory_space<vmem>>, vector<1x128x128xf32>
    %37 = vector.shape_cast %36 : vector<1x128x128xf32> to vector<128x128xf32>
    %cst_43 = arith.constant dense<0.000000e+00> : vector<16x128xf32>
    %38 = tpu.matmul %35, %37, %cst_43 {dimension_numbers = #tpu.dot_dimension_numbers<[1], [0], [0], [1], [0, 0, 1, 1], [], []>} : vector<16x128xf32>, vector<128x128xf32>, vector<16x128xf32> -> vector<16x128xf32>
    %39 = arith.addf %34, %38 : vector<16x128xf32>
    %c2_44 = arith.constant 2 : index
    %c0_45 = arith.constant 0 : index
    %40 = vector.load %arg8[%c2_44, %c0_45] : memref<18x128xf32, #tpu.memory_space<vmem>>, vector<16x128xf32>
    %c2_46 = arith.constant 2 : index
    %c0_47 = arith.constant 0 : index
    %c0_48 = arith.constant 0 : index
    %41 = vector.load %arg4[%c2_46, %c0_47, %c0_48] : memref<3x128x128xf32, #tpu.memory_space<vmem>>, vector<1x128x128xf32>
    %42 = vector.shape_cast %41 : vector<1x128x128xf32> to vector<128x128xf32>
    %cst_49 = arith.constant dense<0.000000e+00> : vector<16x128xf32>
    %43 = tpu.matmul %40, %42, %cst_49 {dimension_numbers = #tpu.dot_dimension_numbers<[1], [0], [0], [1], [0, 0, 1, 1], [], []>} : vector<16x128xf32>, vector<128x128xf32>, vector<16x128xf32> -> vector<16x128xf32>
    %44 = arith.addf %39, %43 : vector<16x128xf32>
    %c0_50 = arith.constant 0 : index
    %c0_51 = arith.constant 0 : index
    %45 = vector.load %arg5[%c0_50, %c0_51] : memref<1x128xf32, #tpu.memory_space<vmem>>, vector<1x128xf32>
    %46 = vector.broadcast %45 : vector<1x128xf32> to vector<16x128xf32>
    %47 = arith.addf %44, %46 : vector<16x128xf32>
    %cst_52 = arith.constant 0.000000e+00 : f32
    %48 = vector.broadcast %cst_52 : f32 to vector<16x128xf32>
    %49 = arith.maximumf %47, %48 : vector<16x128xf32>
    %c0_53 = arith.constant 0 : index
    %c0_54 = arith.constant 0 : index
    %c0_55 = arith.constant 0 : index
    %50 = vector.load %arg6[%c0_53, %c0_54, %c0_55] : memref<1x16x128xf32, #tpu.memory_space<vmem>>, vector<1x16x128xf32>
    %51 = vector.shape_cast %50 : vector<1x16x128xf32> to vector<16x128xf32>
    %52 = vector.shape_cast %49 : vector<16x128xf32> to vector<1x16x128xf32>
    tpu.vector_store %arg6[%c0_53, %c0_54, %c0_55], %52 {strides = array<i32>} : memref<1x16x128xf32, #tpu.memory_space<vmem>>, vector<1x16x128xf32>,
    return
  }
  func.func @transform_0(%arg0: i32) -> (i32, i32, i32) {
    %c0_i32 = arith.constant 0 : i32
    %c0_i32_0 = arith.constant 0 : i32
    %c0_i32_1 = arith.constant 0 : i32
    return %arg0, %c0_i32, %c0_i32_0 : i32, i32, i32
  }
  func.func @transform_1(%arg0: i32) -> (i32, i32, i32) {
    %c0_i32 = arith.constant 0 : i32
    %c0_i32_0 = arith.constant 0 : i32
    %c0_i32_1 = arith.constant 0 : i32
    %c0_i32_2 = arith.constant 0 : i32
    return %c0_i32, %c0_i32_0, %c0_i32_1 : i32, i32, i32
  }
  func.func @transform_2(%arg0: i32) -> (i32, i32) {
    %c0_i32 = arith.constant 0 : i32
    %c0_i32_0 = arith.constant 0 : i32
    %c0_i32_1 = arith.constant 0 : i32
    return %c0_i32, %c0_i32_0 : i32, i32
  }
  func.func @transform_3(%arg0: i32) -> (i32, i32, i32) {
    %c0_i32 = arith.constant 0 : i32
    %c0_i32_0 = arith.constant 0 : i32
    %c0_i32_1 = arith.constant 0 : i32
    %c0_i32_2 = arith.constant 0 : i32
    return %c0_i32, %c0_i32_0, %c0_i32_1 : i32, i32, i32
  }
  func.func @transform_4(%arg0: i32) -> (i32, i32) {
    %c0_i32 = arith.constant 0 : i32
    %c0_i32_0 = arith.constant 0 : i32
    %c0_i32_1 = arith.constant 0 : i32
    return %c0_i32, %c0_i32_0 : i32, i32
  }
  func.func @transform_5(%arg0: i32) -> (i32, i32, i32) {
    %c0_i32 = arith.constant 0 : i32
    %c0_i32_0 = arith.constant 0 : i32
    %c0_i32_1 = arith.constant 0 : i32
    return %arg0, %c0_i32, %c0_i32_0 : i32, i32, i32
  }
}

</mosaic_0001>

<llo_original>
// kernel: tile.13
$region0: #{tile.13}
  #allocation0 [shape = 's32[1]{0}', space=sflag, size = 0x4, scoped, tag = 'scoped memory for tile.13']
  %s0 = inlined_call_operand.vmem [shape: f32[8], index: 0, kind: input, shape index: {}]
  %s1 = inlined_call_operand.vmem [shape: f32[16,8], index: 1, kind: output, shape index: {}]
  // Predicated region
  $region2: #{tile.13} parent=0 // pred_check
    _
  $region3: #{tile.13} parent=0 // pred_check_branch
    %3 = sbr.rel (0) target = $region5
  $region4: #{tile.13} parent=0 // pred_region
    _
  $region5: #{tile.13} parent=0 // pred_fallthru
    _
  %v4 = vld [vmem:[%s0] ss:$0 sm:$0xff]
  %5 = vst [vmem:[%s1] sm:$0xff] %v4
  %s6 = scalar_lea.vmem %s1, 8
  %7 = vst [vmem:[%s6] sm:$0xff] %v4

// kernel: tile.14
$region0: #{tile.14}
  %s0 = inlined_call_operand.vmem [shape: f32[16,8], index: 0, kind: input, shape index: {}]
  %s1 = inlined_call_operand.vmem [shape: f32[1,128], index: 1, kind: output, shape index: {}]
  $region1: #{tile.14} parent=0
    #allocation0 [shape = 'u8[4096]{0}', space=vmem, size = 0x1000, scoped, tag = 'scoped mem for output reshape']
    %v2 = vld [vmem:[%s0] sm:$0x1]
    %vm3 = vcmask 64512
    %4 = vst.msk [vmem:[#allocation0] sm:$0x1] %vm3, %v2
    %s5 = scalar_lea.vmem %s0, 15
    %v6 = vld [vmem:[%s5] sm:$0x1]
    %7 = vrot.lane.b32.xlu0 %v6, 120
    %v8 = vpop.permute.xlu0 %7
    %vm9 = vcmask 1048512
    %10 = vst.msk [vmem:[#allocation0] sm:$0x1] %vm9, %v8
    %s11 = scalar_lea.vmem %s0, 14
    %v12 = vld [vmem:[%s11] sm:$0x1]
    %13 = vrot.lane.b32.xlu0 %v12, 112
    %v14 = vpop.permute.xlu0 %13
    %vm15 = vcmask 982912
    %16 = vst.msk [vmem:[#allocation0] sm:$0x1] %vm15, %v14
    %s17 = scalar_lea.vmem %s0, 13
    %v18 = vld [vmem:[%s17] sm:$0x1]
    %19 = vrot.lane.b32.xlu0 %v18, 104
    %v20 = vpop.permute.xlu0 %19
    %vm21 = vcmask 917312
    %22 = vst.msk [vmem:[#allocation0] sm:$0x1] %vm21, %v20
    %s23 = scalar_lea.vmem %s0, 12
    %v24 = vld [vmem:[%s23] sm:$0x1]
    %25 = vrot.lane.b32.xlu0 %v24, 96
    %v26 = vpop.permute.xlu0 %25
    %vm27 = vcmask 851712
    %28 = vst.msk [vmem:[#allocation0] sm:$0x1] %vm27, %v26
    %s29 = scalar_lea.vmem %s0, 11
    %v30 = vld [vmem:[%s29] sm:$0x1]
    %31 = vrot.lane.b32.xlu0 %v30, 88
    %v32 = vpop.permute.xlu0 %31
    %vm33 = vcmask 786112
    %34 = vst.msk [vmem:[#allocation0] sm:$0x1] %vm33, %v32
    %s35 = scalar_lea.vmem %s0, 10
    %v36 = vld [vmem:[%s35] sm:$0x1]
    %37 = vrot.lane.b32.xlu0 %v36, 80
    %v38 = vpop.permute.xlu0 %37
    %vm39 = vcmask 720512
    %40 = vst.msk [vmem:[#allocation0] sm:$0x1] %vm39, %v38
    %s41 = scalar_lea.vmem %s0, 9
    %v42 = vld [vmem:[%s41] sm:$0x1]
    %43 = vrot.lane.b32.xlu0 %v42, 72
    %v44 = vpop.permute.xlu0 %43
    %vm45 = vcmask 654912
    %46 = vst.msk [vmem:[#allocation0] sm:$0x1] %vm45, %v44
    %s47 = scalar_lea.vmem %s0, 8
    %v48 = vld [vmem:[%s47] sm:$0x1]
    %49 = vrot.lane.b32.xlu0 %v48, 64
    %v50 = vpop.permute.xlu0 %49
    %vm51 = vcmask 589312
    %52 = vst.msk [vmem:[#allocation0] sm:$0x1] %vm51, %v50
    %s53 = scalar_lea.vmem %s0, 7
    %v54 = vld [vmem:[%s53] sm:$0x1]
    %55 = vrot.lane.b32.xlu0 %v54, 56
    %v56 = vpop.permute.xlu0 %55
    %vm57 = vcmask 523712
    %58 = vst.msk [vmem:[#allocation0] sm:$0x1] %vm57, %v56
    %s59 = scalar_lea.vmem %s0, 6
    %v60 = vld [vmem:[%s59] sm:$0x1]
    %61 = vrot.lane.b32.xlu0 %v60, 48
    %v62 = vpop.permute.xlu0 %61
    %vm63 = vcmask 458112
    %64 = vst.msk [vmem:[#allocation0] sm:$0x1] %vm63, %v62
    %s65 = scalar_lea.vmem %s0, 5
    %v66 = vld [vmem:[%s65] sm:$0x1]
    %67 = vrot.lane.b32.xlu0 %v66, 40
    %v68 = vpop.permute.xlu0 %67
    %vm69 = vcmask 392512
    %70 = vst.msk [vmem:[#allocation0] sm:$0x1] %vm69, %v68
    %s71 = scalar_lea.vmem %s0, 4
    %v72 = vld [vmem:[%s71] sm:$0x1]
    %73 = vrot.lane.b32.xlu0 %v72, 32
    %v74 = vpop.permute.xlu0 %73
    %vm75 = vcmask 326912
    %76 = vst.msk [vmem:[#allocation0] sm:$0x1] %vm75, %v74
    %s77 = scalar_lea.vmem %s0, 3
    %v78 = vld [vmem:[%s77] sm:$0x1]
    %79 = vrot.lane.b32.xlu0 %v78, 24
    %v80 = vpop.permute.xlu0 %79
    %vm81 = vcmask 261312
    %82 = vst.msk [vmem:[#allocation0] sm:$0x1] %vm81, %v80
    %s83 = scalar_lea.vmem %s0, 2
    %v84 = vld [vmem:[%s83] sm:$0x1]
    %85 = vrot.lane.b32.xlu0 %v84, 16
    %v86 = vpop.permute.xlu0 %85
    %vm87 = vcmask 195712
    %88 = vst.msk [vmem:[#allocation0] sm:$0x1] %vm87, %v86
    %s89 = scalar_lea.vmem %s0, 1
    %v90 = vld [vmem:[%s89] sm:$0x1]
    %91 = vrot.lane.b32.xlu0 %v90, 8
    %v92 = vpop.permute.xlu0 %91
    %vm93 = vcmask 130112
    %94 = vst.msk [vmem:[#allocation0] sm:$0x1] %vm93, %v92
    %s96 = sshllo.u32 0, 1
    %v98 = vld [vmem:[#allocation0] sm:%s96]
    %s99 = sshllo.u32 0, 1
    %100 = vst [vmem:[%s1] sm:%s99] %v98

// kernel: model_wrapper_nohead_forward.1
$region0: #{model_wrapper_nohead_forward.1}
  #allocation0 [shape = 'u32[]', space=smem, size = 0x4, offset = 0x4, fixed_abs, tag = 'smem constant byte address 0x4 - core index']
  #allocation1 [shape = 'u32[144,128]{1,0:T(1,128)}', space=vmem, size = 0x12000, scoped, tag = 'internal scratch']
  #allocation2 [shape = 'f32[18,64]{1,0:T(8,128)}', space=vmem, size = 0x3000, scoped, tag = 'scratch operand']
  #allocation3 [shape = 'f32[18,128]{1,0:T(8,128)}', space=vmem, size = 0x3000, scoped, tag = 'scratch operand']
  %s0 = inlined_call_operand.vmem [shape: f32[2,16,64], index: 0, kind: input, shape index: {}]
  %s1 = inlined_call_operand.vmem [shape: f32[3,64,128], index: 1, kind: input, shape index: {}]
  %s2 = inlined_call_operand.vmem [shape: f32[1,128], index: 2, kind: input, shape index: {}]
  %s3 = inlined_call_operand.vmem [shape: f32[3,128,128], index: 3, kind: input, shape index: {}]
  %s4 = inlined_call_operand.vmem [shape: f32[1,128], index: 4, kind: input, shape index: {}]
  %s5 = inlined_call_operand.vmem [shape: f32[2,16,128], index: 5, kind: output, shape index: {}]
  %s6 = sld [smem:[#allocation0]]
  $region53: #{model_wrapper_nohead_forward.1} parent=0
    _
  %s8 = ssub.s32 1, %s6
  %s9 = scalar_select 0, %s8, %s6
  loop: start=0, step=1, limit=4
  $region2: #{model_wrapper_nohead_forward.1} parent=0 // loop_pre_header
    _
  $region3: #{model_wrapper_nohead_forward.1} parent=0 // loop_header
    %s11 = sphi 0, %s15
    %p12 = scmp.ge.s32.totalorder %s11, 4
    %s21 = sphi 0, %s23
    %s24 = sphi 0, %s21
    %s25 = sphi 0, %s24
    %s41 = sphi 0, %s25
    %s45 = sphi 0, %s45
    %s47 = sphi 0, %s45
    %s48 = sphi 0, %s47
    %s62 = sphi 0, %s48
    %s66 = sphi 0, %s66
    %s68 = sphi 0, %s66
    %s69 = sphi 0, %s68
    %s83 = sphi 0, %s69
    %s87 = sphi 0, %s87
    %s89 = sphi 0, %s87
    %s90 = sphi 0, %s89
    %s104 = sphi 0, %s90
    %s108 = sphi 0, %s108
    %s110 = sphi 0, %s108
    %s111 = sphi 0, %s110
    %s125 = sphi 0, %s111
    %s131 = sphi 0, %s133
    %s134 = sphi 0, %s131
    %s135 = sphi 0, %s134
    %s151 = sphi 0, %s135
  $region4: #{model_wrapper_nohead_forward.1} parent=0 // loop_header_branch
    %14 = sbr.rel (%p12) target = $region8
  $region5: #{model_wrapper_nohead_forward.1} parent=0 // loop_body
    %s16 = ssub.s32 %s11, 1
    %s17 = ssub.s32 %s11, 2
    %s18 = sadd.s32 %s11, 1
    %s19 = ssub.s32 %s11, %s18
    %p20 = scmp.eq.s32.totalorder %s19, 0
    %s22 = sadd.s32 %s21, 1
    %s23 = scalar_select %p20, %s21, %s22
    %p26 = pneg %p20
    %p27 = scmp.eq.s32.totalorder %s11, 1
    %p28 = por %p26, %p27
    %p29 = scmp.ne.s32.totalorder %s21, %s24
    %p30 = scmp.eq.s32.totalorder %s11, 0
    %p31 = por %p29, %p30
    %p32 = scmp.ne.s32.totalorder %s21, %s24
    %p33 = scmp.eq.s32.totalorder %s16, 1
    %p34 = por %p32, %p33
    %p35 = scmp.ne.s32.totalorder %s24, %s25
    %p36 = scmp.eq.s32.totalorder %s16, 0
    %p37 = por %p35, %p36
    %p38 = scmp.ne.s32.totalorder %s24, %s25
    %p39 = scmp.eq.s32.totalorder %s17, 1
    %p40 = por %p38, %p39
    %p42 = scmp.ne.s32.totalorder %s25, %s41
    %p43 = scmp.eq.s32.totalorder %s17, 0
    %p44 = por %p42, %p43
    %s46 = sadd.s32 %s45, 1
    %p49 = scmp.eq.s32.totalorder %s11, 1
    %p50 = scmp.ne.s32.totalorder %s45, %s47
    %p51 = scmp.eq.s32.totalorder %s11, 0
    %p52 = por %p50, %p51
    %p53 = scmp.ne.s32.totalorder %s45, %s47
    %p54 = scmp.eq.s32.totalorder %s16, 1
    %p55 = por %p53, %p54
    %p56 = scmp.ne.s32.totalorder %s47, %s48
    %p57 = scmp.eq.s32.totalorder %s16, 0
    %p58 = por %p56, %p57
    %p59 = scmp.ne.s32.totalorder %s47, %s48
    %p60 = scmp.eq.s32.totalorder %s17, 1
    %p61 = por %p59, %p60
    %p63 = scmp.ne.s32.totalorder %s48, %s62
    %p64 = scmp.eq.s32.totalorder %s17, 0
    %p65 = por %p63, %p64
    %s67 = sadd.s32 %s66, 1
    %p70 = scmp.eq.s32.totalorder %s11, 1
    %p71 = scmp.ne.s32.totalorder %s66, %s68
    %p72 = scmp.eq.s32.totalorder %s11, 0
    %p73 = por %p71, %p72
    %p74 = scmp.ne.s32.totalorder %s66, %s68
    %p75 = scmp.eq.s32.totalorder %s16, 1
    %p76 = por %p74, %p75
    %p77 = scmp.ne.s32.totalorder %s68, %s69
    %p78 = scmp.eq.s32.totalorder %s16, 0
    %p79 = por %p77, %p78
    %p80 = scmp.ne.s32.totalorder %s68, %s69
    %p81 = scmp.eq.s32.totalorder %s17, 1
    %p82 = por %p80, %p81
    %p84 = scmp.ne.s32.totalorder %s69, %s83
    %p85 = scmp.eq.s32.totalorder %s17, 0
    %p86 = por %p84, %p85
    %s88 = sadd.s32 %s87, 1
    %p91 = scmp.eq.s32.totalorder %s11, 1
    %p92 = scmp.ne.s32.totalorder %s87, %s89
    %p93 = scmp.eq.s32.totalorder %s11, 0
    %p94 = por %p92, %p93
    %p95 = scmp.ne.s32.totalorder %s87, %s89
    %p96 = scmp.eq.s32.totalorder %s16, 1
    %p97 = por %p95, %p96
    %p98 = scmp.ne.s32.totalorder %s89, %s90
    %p99 = scmp.eq.s32.totalorder %s16, 0
    %p100 = por %p98, %p99
    %p101 = scmp.ne.s32.totalorder %s89, %s90
    %p102 = scmp.eq.s32.totalorder %s17, 1
    %p103 = por %p101, %p102
    %p105 = scmp.ne.s32.totalorder %s90, %s104
    %p106 = scmp.eq.s32.totalorder %s17, 0
    %p107 = por %p105, %p106
    %s109 = sadd.s32 %s108, 1
    %p112 = scmp.eq.s32.totalorder %s11, 1
    %p113 = scmp.ne.s32.totalorder %s108, %s110
    %p114 = scmp.eq.s32.totalorder %s11, 0
    %p115 = por %p113, %p114
    %p116 = scmp.ne.s32.totalorder %s108, %s110
    %p117 = scmp.eq.s32.totalorder %s16, 1
    %p118 = por %p116, %p117
    %p119 = scmp.ne.s32.totalorder %s110, %s111
    %p120 = scmp.eq.s32.totalorder %s16, 0
    %p121 = por %p119, %p120
    %p122 = scmp.ne.s32.totalorder %s110, %s111
    %p123 = scmp.eq.s32.totalorder %s17, 1
    %p124 = por %p122, %p123
    %p126 = scmp.ne.s32.totalorder %s111, %s125
    %p127 = scmp.eq.s32.totalorder %s17, 0
    %p128 = por %p126, %p127
    %s129 = ssub.s32 %s11, %s18
    %p130 = scmp.eq.s32.totalorder %s129, 0
    %s132 = sadd.s32 %s131, 1
    %s133 = scalar_select %p130, %s131, %s132
    %p136 = pneg %p130
    %p137 = scmp.eq.s32.totalorder %s11, 1
    %p138 = por %p136, %p137
    %p139 = scmp.ne.s32.totalorder %s131, %s134
    %p140 = scmp.eq.s32.totalorder %s11, 0
    %p141 = por %p139, %p140
    %p142 = scmp.ne.s32.totalorder %s131, %s134
    %p143 = scmp.eq.s32.totalorder %s16, 1
    %p144 = por %p142, %p143
    %p145 = scmp.ne.s32.totalorder %s134, %s135
    %p146 = scmp.eq.s32.totalorder %s16, 0
    %p147 = por %p145, %p146
    %p148 = scmp.ne.s32.totalorder %s134, %s135
    %p149 = scmp.eq.s32.totalorder %s17, 1
    %p150 = por %p148, %p149
    %p152 = scmp.ne.s32.totalorder %s135, %s151
    %p153 = scmp.eq.s32.totalorder %s17, 0
    %p154 = por %p152, %p153
    %p155 = scmp.le.s32.totalorder 1, %s11
    %p156 = scmp.lt.s32.totalorder %s11, 3
    %p157 = pnand %p155, %p156
    %p158 = pneg %p157
    // Predicated region
    $region9: #{model_wrapper_nohead_forward.1} parent=5 // pred_check
      _
    $region10: #{model_wrapper_nohead_forward.1} parent=5 // pred_check_branch
      %160 = sbr.rel (%p157) target = $region12
    $region11: #{model_wrapper_nohead_forward.1} parent=5 // pred_region
      %s161 = ssub.s32 %s11, 1
      // Predicated region
      $region13: #{model_wrapper_nohead_forward.1} parent=11 // pred_check
        %p162 = pneg %p58
      $region14: #{model_wrapper_nohead_forward.1} parent=11 // pred_check_branch
        %164 = sbr.rel (%p162) target = $region16
      $region15: #{model_wrapper_nohead_forward.1} parent=11 // pred_region
        _
      $region16: #{model_wrapper_nohead_forward.1} parent=11 // pred_fallthru
        _
      // Predicated region
      $region17: #{model_wrapper_nohead_forward.1} parent=11 // pred_check
        %p165 = pneg %p79
      $region18: #{model_wrapper_nohead_forward.1} parent=11 // pred_check_branch
        %167 = sbr.rel (%p165) target = $region20
      $region19: #{model_wrapper_nohead_forward.1} parent=11 // pred_region
        _
      $region20: #{model_wrapper_nohead_forward.1} parent=11 // pred_fallthru
        _
      // Predicated region
      $region21: #{model_wrapper_nohead_forward.1} parent=11 // pred_check
        %p168 = pneg %p100
      $region22: #{model_wrapper_nohead_forward.1} parent=11 // pred_check_branch
        %170 = sbr.rel (%p168) target = $region24
      $region23: #{model_wrapper_nohead_forward.1} parent=11 // pred_region
        _
      $region24: #{model_wrapper_nohead_forward.1} parent=11 // pred_fallthru
        _
      // Predicated region
      $region25: #{model_wrapper_nohead_forward.1} parent=11 // pred_check
        %p171 = pneg %p121
      $region26: #{model_wrapper_nohead_forward.1} parent=11 // pred_check_branch
        %173 = sbr.rel (%p171) target = $region28
      $region27: #{model_wrapper_nohead_forward.1} parent=11 // pred_region
        _
      $region28: #{model_wrapper_nohead_forward.1} parent=11 // pred_fallthru
        _
    $region12: #{model_wrapper_nohead_forward.1} parent=5 // pred_fallthru
      _
    %p174 = scmp.lt.s32.totalorder %s11, 2
    // Predicated region
    $region29: #{model_wrapper_nohead_forward.1} parent=5 // pred_check
      %p175 = pneg %p174
    $region30: #{model_wrapper_nohead_forward.1} parent=5 // pred_check_branch
      %177 = sbr.rel (%p175) target = $region32
    $region31: #{model_wrapper_nohead_forward.1} parent=5 // pred_region
      // Predicated region
      $region33: #{model_wrapper_nohead_forward.1} parent=31 // pred_check
        %p178 = pneg %p31
      $region34: #{model_wrapper_nohead_forward.1} parent=31 // pred_check_branch
        %180 = sbr.rel (%p178) target = $region36
      $region35: #{model_wrapper_nohead_forward.1} parent=31 // pred_region
        %p181 = scmp.lt.s32.totalorder %s11, 1
        %s182 = scalar_select %p181, %s11, 1
        %s183 = smul.addr %s182, 2
        %s184 = smul.addr %s183, 8
        %s185 = scalar_lea.vmem %s0, %s184
      $region36: #{model_wrapper_nohead_forward.1} parent=31 // pred_fallthru
        _
    $region32: #{model_wrapper_nohead_forward.1} parent=5 // pred_fallthru
      _
    %p186 = scmp.le.s32.totalorder 1, %s11
    %p187 = scmp.lt.s32.totalorder %s11, 3
    %p188 = pnand %p186, %p187
    %p189 = pneg %p188
    // Predicated region
    $region37: #{model_wrapper_nohead_forward.1} parent=5 // pred_check
      _
    $region38: #{model_wrapper_nohead_forward.1} parent=5 // pred_check_branch
      %191 = sbr.rel (%p188) target = $region40
    $region39: #{model_wrapper_nohead_forward.1} parent=5 // pred_region
      %s192 = ssub.s32 %s11, 1
      %p193 = scmp.lt.s32.totalorder %s16, 1
      %s194 = scalar_select %p193, %s16, 1
      %s195 = smul.addr %s194, 2
      %s196 = smul.addr %s195, 8
      %s197 = scalar_lea.vmem %s0, %s196
      %p198 = pneg %p37
      %p199 = pneg %p34
      %p200 = pneg %p58
      %p201 = pneg %p55
      %p202 = pneg %p79
      %p203 = pneg %p76
      %p204 = pneg %p100
      %p205 = pneg %p97
      %p206 = pneg %p121
      %p207 = pneg %p118
      %p208 = pneg %p147
      %p209 = pneg %p144
      %p210 = scmp.lt.s32.totalorder %s16, 1
      %s211 = scalar_select %p210, %s16, 1
      %s212 = smul.addr %s211, 2
      %s213 = smul.addr %s212, 8
      %s214 = scalar_lea.vmem %s5, %s213
      %p215 = scmp.lt.s32.totalorder %s16, 1
      %s216 = scalar_select %p215, %s16, 1
      %s217 = smul.addr %s216, 2
      %s218 = smul.addr %s217, 8
      %s219 = scalar_lea.vmem %s0, %s218
      %p220 = scmp.lt.s32.totalorder %s16, 1
      %s221 = scalar_select %p220, %s16, 1
      %s222 = smul.addr %s221, 2
      %s223 = smul.addr %s222, 8
      %s224 = scalar_lea.vmem %s5, %s223
      %vm225 = vcmask 523264
      %226 = vst.msk [vmem:[#allocation2] sm:$0xff] %vm225, 0.0
      %227 = vst.msk [vmem:[#allocation2 + $0x8] sm:$0xff] %vm225, 0.0
      %vm228 = vcmask 517120
      %229 = vst.msk [vmem:[#allocation2 + $0x10] sm:$0x3] %vm228, 0.0
      %v230 = vld [vmem:[%s219] sm:$0xff]
      %v231 = vld [vmem:[%s219 + $0x8] sm:$0xff]
      %232 = vst.msk [vmem:[#allocation2 + $0x1] sm:$0xff] %vm225, %v230
      %233 = vst.msk [vmem:[#allocation2 + $0x9] sm:$0xff] %vm225, %v231
      %v234 = vld [vmem:[#allocation2] sm:$0xff]
      %v235 = vld [vmem:[#allocation2 + $0x8] sm:$0xff]
      %v236 = vld [vmem:[%s1] sm:$0xff]
      %v237 = vld [vmem:[%s1 + $0x8] sm:$0xff]
      %v238 = vld [vmem:[%s1 + $0x10] sm:$0xff]
      %v239 = vld [vmem:[%s1 + $0x18] sm:$0xff]
      %v240 = vld [vmem:[%s1 + $0x20] sm:$0xff]
      %v241 = vld [vmem:[%s1 + $0x28] sm:$0xff]
      %v242 = vld [vmem:[%s1 + $0x30] sm:$0xff]
      %v243 = vld [vmem:[%s1 + $0x38] sm:$0xff]
      %v244 = vld [vmem:[#allocation2 + $0x1] sm:$0xff]
      %v245 = vld [vmem:[#allocation2 + $0x9] sm:$0xff]
      %s246 = scalar_lea.vmem %s1, 64
      %v247 = vld [vmem:[%s246] sm:$0xff]
      %v248 = vld [vmem:[%s246 + $0x8] sm:$0xff]
      %v249 = vld [vmem:[%s246 + $0x10] sm:$0xff]
      %v250 = vld [vmem:[%s246 + $0x18] sm:$0xff]
      %v251 = vld [vmem:[%s246 + $0x20] sm:$0xff]
      %v252 = vld [vmem:[%s246 + $0x28] sm:$0xff]
      %v253 = vld [vmem:[%s246 + $0x30] sm:$0xff]
      %v254 = vld [vmem:[%s246 + $0x38] sm:$0xff]
      %v256 = vsel %vm225, %v244, 0
      %v259 = vsel %vm225, %v245, 0
      %261 = vmatprep.subr.mxu0 0.0
      %262 = vmatpush1.msra.mxu0 %v247
      %263 = vmatprep.subr.mxu0 0.0
      %264 = vmatpush1.msra.mxu0 %v248
      %265 = vmatprep.subr.mxu0 0.0
      %266 = vmatpush1.msra.mxu0 %v249
      %267 = vmatprep.subr.mxu0 0.0
      %268 = vmatpush1.msra.mxu0 %v250
      %269 = vmatprep.subr.mxu0 0.0
      %270 = vmatpush1.msra.mxu0 %v251
      %271 = vmatprep.subr.mxu0 0.0
      %272 = vmatpush1.msra.mxu0 %v252
      %273 = vmatprep.subr.mxu0 0.0
      %274 = vmatpush1.msra.mxu0 %v253
      %275 = vmatprep.subr.mxu0 0.0
      %276 = vmatpush1.msra.mxu0 %v254
      %277 = vmatprep.subr.mxu0 0.0
      %278 = vmatpush1.msra.mxu0 0.0
      %279 = vmatprep.subr.mxu0 0.0
      %280 = vmatpush1.msra.mxu0 0.0
      %281 = vmatprep.subr.mxu0 0.0
      %282 = vmatpush1.msra.mxu0 0.0
      %283 = vmatprep.subr.mxu0 0.0
      %284 = vmatpush1.msra.mxu0 0.0
      %285 = vmatprep.subr.mxu0 0.0
      %286 = vmatpush1.msra.mxu0 0.0
      %287 = vmatprep.subr.mxu0 0.0
      %288 = vmatpush1.msra.mxu0 0.0
      %289 = vmatprep.subr.mxu0 0.0
      %290 = vmatpush1.msra.mxu0 0.0
      %291 = vmatprep.subr.mxu0 0.0
      %292 = vmatpush1.msra.mxu0 0.0
      %293 = vmatprep.subr.mxu0 0.0
      %294 = vmatpush1.msra.mxu0 0.0
      %295 = vmatprep.subr.mxu0 0.0
      %296 = vmatpush1.msra.mxu0 0.0
      %297 = vmatprep.subr.mxu0 0.0
      %298 = vmatpush1.msra.mxu0 0.0
      %299 = vmatprep.subr.mxu0 0.0
      %300 = vmatpush1.msra.mxu0 0.0
      %301 = vmatprep.subr.mxu0 0.0
      %302 = vmatpush1.msra.mxu0 0.0
      %303 = vmatprep.subr.mxu0 0.0
      %304 = vmatpush1.msra.mxu0 0.0
      %305 = vmatprep.subr.mxu0 0.0
      %306 = vmatpush1.msra.mxu0 0.0
      %307 = vmatprep.subr.mxu0 0.0
      %308 = vmatpush1.msra.mxu0 0.0
      %309 = vmatprep.subr.mxu0 0.0
      %310 = vmatpush1.msra.mxu0 0.0
      %311 = vmatprep.subr.mxu0 0.0
      %312 = vmatpush1.msra.mxu0 0.0
      %313 = vmatprep.subr.mxu0 0.0
      %314 = vmatpush1.msra.mxu0 0.0
      %315 = vmatprep.subr.mxu0 0.0
      %316 = vmatpush1.msra.mxu0 0.0
      %317 = vmatprep.subr.mxu0 0.0
      %318 = vmatpush1.msra.mxu0 0.0
      %319 = vmatprep.subr.mxu0 0.0
      %320 = vmatpush1.msra.mxu0 0.0
      %321 = vmatprep.subr.mxu0 0.0
      %322 = vmatpush1.msra.mxu0 0.0
      %323 = vmatprep.subr.mxu0 0.0
      %324 = vmatpush1.msra.mxu0 0.0
      %325 = vmatprep.mubr.f32.mxu0 0.0
      %326 = vmatmul.mubr.f32.gmra.mrb[0].mxu0 %v256
      %v327 = vpop.f32.mrb[0].mxu0
      %v328 = vadd.f32 0.0, %v327
      %v329 = vpop.f32.mrb[0].mxu0
      %330 = vmatprep.mubr.f32.mxu0 0.0
      %331 = vmatmul.mubr.f32.gmra.mrb[0].mxu0 %v259
      %v332 = vpop.f32.mrb[0].mxu0
      %v333 = vadd.f32 0.0, %v332
      %v334 = vpop.f32.mrb[0].mxu0
      %335 = vdwg.mxu0
      %v337 = vsel %vm225, %v234, 0
      %v340 = vsel %vm225, %v235, 0
      %342 = vmatprep.subr.mxu0 0.0
      %343 = vmatpush1.msra.mxu0 %v236
      %344 = vmatprep.subr.mxu0 0.0
      %345 = vmatpush1.msra.mxu0 %v237
      %346 = vmatprep.subr.mxu0 0.0
      %347 = vmatpush1.msra.mxu0 %v238
      %348 = vmatprep.subr.mxu0 0.0
      %349 = vmatpush1.msra.mxu0 %v239
      %350 = vmatprep.subr.mxu0 0.0
      %351 = vmatpush1.msra.mxu0 %v240
      %352 = vmatprep.subr.mxu0 0.0
      %353 = vmatpush1.msra.mxu0 %v241
      %354 = vmatprep.subr.mxu0 0.0
      %355 = vmatpush1.msra.mxu0 %v242
      %356 = vmatprep.subr.mxu0 0.0
      %357 = vmatpush1.msra.mxu0 %v243
      %358 = vmatprep.subr.mxu0 0.0
      %359 = vmatpush1.msra.mxu0 0.0
      %360 = vmatprep.subr.mxu0 0.0
      %361 = vmatpush1.msra.mxu0 0.0
      %362 = vmatprep.subr.mxu0 0.0
      %363 = vmatpush1.msra.mxu0 0.0
      %364 = vmatprep.subr.mxu0 0.0
      %365 = vmatpush1.msra.mxu0 0.0
      %366 = vmatprep.subr.mxu0 0.0
      %367 = vmatpush1.msra.mxu0 0.0
      %368 = vmatprep.subr.mxu0 0.0
      %369 = vmatpush1.msra.mxu0 0.0
      %370 = vmatprep.subr.mxu0 0.0
      %371 = vmatpush1.msra.mxu0 0.0
      %372 = vmatprep.subr.mxu0 0.0
      %373 = vmatpush1.msra.mxu0 0.0
      %374 = vmatprep.subr.mxu0 0.0
      %375 = vmatpush1.msra.mxu0 0.0
      %376 = vmatprep.subr.mxu0 0.0
      %377 = vmatpush1.msra.mxu0 0.0
      %378 = vmatprep.subr.mxu0 0.0
      %379 = vmatpush1.msra.mxu0 0.0
      %380 = vmatprep.subr.mxu0 0.0
      %381 = vmatpush1.msra.mxu0 0.0
      %382 = vmatprep.subr.mxu0 0.0
      %383 = vmatpush1.msra.mxu0 0.0
      %384 = vmatprep.subr.mxu0 0.0
      %385 = vmatpush1.msra.mxu0 0.0
      %386 = vmatprep.subr.mxu0 0.0
      %387 = vmatpush1.msra.mxu0 0.0
      %388 = vmatprep.subr.mxu0 0.0
      %389 = vmatpush1.msra.mxu0 0.0
      %390 = vmatprep.subr.mxu0 0.0
      %391 = vmatpush1.msra.mxu0 0.0
      %392 = vmatprep.subr.mxu0 0.0
      %393 = vmatpush1.msra.mxu0 0.0
      %394 = vmatprep.subr.mxu0 0.0
      %395 = vmatpush1.msra.mxu0 0.0
      %396 = vmatprep.subr.mxu0 0.0
      %397 = vmatpush1.msra.mxu0 0.0
      %398 = vmatprep.subr.mxu0 0.0
      %399 = vmatpush1.msra.mxu0 0.0
      %400 = vmatprep.subr.mxu0 0.0
      %401 = vmatpush1.msra.mxu0 0.0
      %402 = vmatprep.subr.mxu0 0.0
      %403 = vmatpush1.msra.mxu0 0.0
      %404 = vmatprep.subr.mxu0 0.0
      %405 = vmatpush1.msra.mxu0 0.0
      %406 = vmatprep.mubr.f32.mxu0 0.0
      %407 = vmatmul.mubr.f32.gmra.mrb[0].mxu0 %v337
      %v408 = vpop.f32.mrb[0].mxu0
      %v409 = vadd.f32 %v328, %v408
      %v410 = vpop.f32.mrb[0].mxu0
      %411 = vmatprep.mubr.f32.mxu0 0.0
      %412 = vmatmul.mubr.f32.gmra.mrb[0].mxu0 %v340
      %v413 = vpop.f32.mrb[0].mxu0
      %v414 = vadd.f32 %v333, %v413
      %v415 = vpop.f32.mrb[0].mxu0
      %416 = vdwg.mxu0
      %v417 = vld [vmem:[#allocation2 + $0x2] sm:$0xff]
      %v418 = vld [vmem:[#allocation2 + $0xa] sm:$0xff]
      %s419 = scalar_lea.vmem %s1, 128
      %v420 = vld [vmem:[%s419] sm:$0xff]
      %v421 = vld [vmem:[%s419 + $0x8] sm:$0xff]
      %v422 = vld [vmem:[%s419 + $0x10] sm:$0xff]
      %v423 = vld [vmem:[%s419 + $0x18] sm:$0xff]
      %v424 = vld [vmem:[%s419 + $0x20] sm:$0xff]
      %v425 = vld [vmem:[%s419 + $0x28] sm:$0xff]
      %v426 = vld [vmem:[%s419 + $0x30] sm:$0xff]
      %v427 = vld [vmem:[%s419 + $0x38] sm:$0xff]
      %v429 = vsel %vm225, %v417, 0
      %v432 = vsel %vm225, %v418, 0
      %434 = vmatprep.subr.mxu0 0.0
      %435 = vmatpush1.msra.mxu0 %v420
      %436 = vmatprep.subr.mxu0 0.0
      %437 = vmatpush1.msra.mxu0 %v421
      %438 = vmatprep.subr.mxu0 0.0
      %439 = vmatpush1.msra.mxu0 %v422
      %440 = vmatprep.subr.mxu0 0.0
      %441 = vmatpush1.msra.mxu0 %v423
      %442 = vmatprep.subr.mxu0 0.0
      %443 = vmatpush1.msra.mxu0 %v424
      %444 = vmatprep.subr.mxu0 0.0
      %445 = vmatpush1.msra.mxu0 %v425
      %446 = vmatprep.subr.mxu0 0.0
      %447 = vmatpush1.msra.mxu0 %v426
      %448 = vmatprep.subr.mxu0 0.0
      %449 = vmatpush1.msra.mxu0 %v427
      %450 = vmatprep.subr.mxu0 0.0
      %451 = vmatpush1.msra.mxu0 0.0
      %452 = vmatprep.subr.mxu0 0.0
      %453 = vmatpush1.msra.mxu0 0.0
      %454 = vmatprep.subr.mxu0 0.0
      %455 = vmatpush1.msra.mxu0 0.0
      %456 = vmatprep.subr.mxu0 0.0
      %457 = vmatpush1.msra.mxu0 0.0
      %458 = vmatprep.subr.mxu0 0.0
      %459 = vmatpush1.msra.mxu0 0.0
      %460 = vmatprep.subr.mxu0 0.0
      %461 = vmatpush1.msra.mxu0 0.0
      %462 = vmatprep.subr.mxu0 0.0
      %463 = vmatpush1.msra.mxu0 0.0
      %464 = vmatprep.subr.mxu0 0.0
      %465 = vmatpush1.msra.mxu0 0.0
      %466 = vmatprep.subr.mxu0 0.0
      %467 = vmatpush1.msra.mxu0 0.0
      %468 = vmatprep.subr.mxu0 0.0
      %469 = vmatpush1.msra.mxu0 0.0
      %470 = vmatprep.subr.mxu0 0.0
      %471 = vmatpush1.msra.mxu0 0.0
      %472 = vmatprep.subr.mxu0 0.0
      %473 = vmatpush1.msra.mxu0 0.0
      %474 = vmatprep.subr.mxu0 0.0
      %475 = vmatpush1.msra.mxu0 0.0
      %476 = vmatprep.subr.mxu0 0.0
      %477 = vmatpush1.msra.mxu0 0.0
      %478 = vmatprep.subr.mxu0 0.0
      %479 = vmatpush1.msra.mxu0 0.0
      %480 = vmatprep.subr.mxu0 0.0
      %481 = vmatpush1.msra.mxu0 0.0
      %482 = vmatprep.subr.mxu0 0.0
      %483 = vmatpush1.msra.mxu0 0.0
      %484 = vmatprep.subr.mxu0 0.0
      %485 = vmatpush1.msra.mxu0 0.0
      %486 = vmatprep.subr.mxu0 0.0
      %487 = vmatpush1.msra.mxu0 0.0
      %488 = vmatprep.subr.mxu0 0.0
      %489 = vmatpush1.msra.mxu0 0.0
      %490 = vmatprep.subr.mxu0 0.0
      %491 = vmatpush1.msra.mxu0 0.0
      %492 = vmatprep.subr.mxu0 0.0
      %493 = vmatpush1.msra.mxu0 0.0
      %494 = vmatprep.subr.mxu0 0.0
      %495 = vmatpush1.msra.mxu0 0.0
      %496 = vmatprep.subr.mxu0 0.0
      %497 = vmatpush1.msra.mxu0 0.0
      %498 = vmatprep.mubr.f32.mxu0 0.0
      %499 = vmatmul.mubr.f32.gmra.mrb[0].mxu0 %v429
      %v500 = vpop.f32.mrb[0].mxu0
      %v501 = vadd.f32 0.0, %v500
      %v502 = vpop.f32.mrb[0].mxu0
      %503 = vmatprep.mubr.f32.mxu0 0.0
      %504 = vmatmul.mubr.f32.gmra.mrb[0].mxu0 %v432
      %v505 = vpop.f32.mrb[0].mxu0
      %v506 = vadd.f32 0.0, %v505
      %v507 = vpop.f32.mrb[0].mxu0
      %508 = vdwg.mxu0
      %v509 = vadd.f32 %v409, %v501
      %v510 = vadd.f32 %v414, %v506
      %v511 = vld [vmem:[%s2] sm:$0x1]
      %v513 = vlaneseq
      %v514 = vshrl.u32 %v513, 7
      %v515 = vsub.s32 0, %v514
      %v516 = vrot.slane %v511, %v515
      %v518 = vadd.f32 %v509, %v516
      %v519 = vadd.f32 %v510, %v516
      %v520 = vmax.f32 %v518, 0.0
      %v521 = vmax.f32 %v519, 0.0
      %522 = vst [vmem:[#allocation3] sm:$0xff] 0.0
      %523 = vst [vmem:[#allocation3 + $0x8] sm:$0xff] 0.0
      %524 = vst [vmem:[#allocation3 + $0x10] sm:$0x3] 0.0
      %525 = vst [vmem:[#allocation3 + $0x1] sm:$0xff] %v520
      %526 = vst [vmem:[#allocation3 + $0x9] sm:$0xff] %v521
      %v527 = vld [vmem:[#allocation3] sm:$0xff]
      %v528 = vld [vmem:[#allocation3 + $0x8] sm:$0xff]
      %v529 = vld [vmem:[%s3] sm:$0xff]
      %v530 = vld [vmem:[%s3 + $0x8] sm:$0xff]
      %v531 = vld [vmem:[%s3 + $0x10] sm:$0xff]
      %v532 = vld [vmem:[%s3 + $0x18] sm:$0xff]
      %v533 = vld [vmem:[%s3 + $0x20] sm:$0xff]
      %v534 = vld [vmem:[%s3 + $0x28] sm:$0xff]
      %v535 = vld [vmem:[%s3 + $0x30] sm:$0xff]
      %v536 = vld [vmem:[%s3 + $0x38] sm:$0xff]
      %v537 = vld [vmem:[%s3 + $0x40] sm:$0xff]
      %v538 = vld [vmem:[%s3 + $0x48] sm:$0xff]
      %v539 = vld [vmem:[%s3 + $0x50] sm:$0xff]
      %v540 = vld [vmem:[%s3 + $0x58] sm:$0xff]
      %v541 = vld [vmem:[%s3 + $0x60] sm:$0xff]
      %v542 = vld [vmem:[%s3 + $0x68] sm:$0xff]
      %v543 = vld [vmem:[%s3 + $0x70] sm:$0xff]
      %v544 = vld [vmem:[%s3 + $0x78] sm:$0xff]
      %v545 = vld [vmem:[#allocation3 + $0x1] sm:$0xff]
      %v546 = vld [vmem:[#allocation3 + $0x9] sm:$0xff]
      %s547 = scalar_lea.vmem %s3, 128
      %v548 = vld [vmem:[%s547] sm:$0xff]
      %v549 = vld [vmem:[%s547 + $0x8] sm:$0xff]
      %v550 = vld [vmem:[%s547 + $0x10] sm:$0xff]
      %v551 = vld [vmem:[%s547 + $0x18] sm:$0xff]
      %v552 = vld [vmem:[%s547 + $0x20] sm:$0xff]
      %v553 = vld [vmem:[%s547 + $0x28] sm:$0xff]
      %v554 = vld [vmem:[%s547 + $0x30] sm:$0xff]
      %v555 = vld [vmem:[%s547 + $0x38] sm:$0xff]
      %v556 = vld [vmem:[%s547 + $0x40] sm:$0xff]
      %v557 = vld [vmem:[%s547 + $0x48] sm:$0xff]
      %v558 = vld [vmem:[%s547 + $0x50] sm:$0xff]
      %v559 = vld [vmem:[%s547 + $0x58] sm:$0xff]
      %v560 = vld [vmem:[%s547 + $0x60] sm:$0xff]
      %v561 = vld [vmem:[%s547 + $0x68] sm:$0xff]
      %v562 = vld [vmem:[%s547 + $0x70] sm:$0xff]
      %v563 = vld [vmem:[%s547 + $0x78] sm:$0xff]
      %564 = vmatprep.subr.mxu0 0.0
      %565 = vmatpush1.msra.mxu0 %v548
      %566 = vmatprep.subr.mxu0 0.0
      %567 = vmatpush1.msra.mxu0 %v549
      %568 = vmatprep.subr.mxu0 0.0
      %569 = vmatpush1.msra.mxu0 %v550
      %570 = vmatprep.subr.mxu0 0.0
      %571 = vmatpush1.msra.mxu0 %v551
      %572 = vmatprep.subr.mxu0 0.0
      %573 = vmatpush1.msra.mxu0 %v552
      %574 = vmatprep.subr.mxu0 0.0
      %575 = vmatpush1.msra.mxu0 %v553
      %576 = vmatprep.subr.mxu0 0.0
      %577 = vmatpush1.msra.mxu0 %v554
      %578 = vmatprep.subr.mxu0 0.0
      %579 = vmatpush1.msra.mxu0 %v555
      %580 = vmatprep.subr.mxu0 0.0
      %581 = vmatpush1.msra.mxu0 %v556
      %582 = vmatprep.subr.mxu0 0.0
      %583 = vmatpush1.msra.mxu0 %v557
      %584 = vmatprep.subr.mxu0 0.0
      %585 = vmatpush1.msra.mxu0 %v558
      %586 = vmatprep.subr.mxu0 0.0
      %587 = vmatpush1.msra.mxu0 %v559
      %588 = vmatprep.subr.mxu0 0.0
      %589 = vmatpush1.msra.mxu0 %v560
      %590 = vmatprep.subr.mxu0 0.0
      %591 = vmatpush1.msra.mxu0 %v561
      %592 = vmatprep.subr.mxu0 0.0
      %593 = vmatpush1.msra.mxu0 %v562
      %594 = vmatprep.subr.mxu0 0.0
      %595 = vmatpush1.msra.mxu0 %v563
      %596 = vmatprep.subr.mxu0 0.0
      %597 = vmatpush1.msra.mxu0 0.0
      %598 = vmatprep.subr.mxu0 0.0
      %599 = vmatpush1.msra.mxu0 0.0
      %600 = vmatprep.subr.mxu0 0.0
      %601 = vmatpush1.msra.mxu0 0.0
      %602 = vmatprep.subr.mxu0 0.0
      %603 = vmatpush1.msra.mxu0 0.0
      %604 = vmatprep.subr.mxu0 0.0
      %605 = vmatpush1.msra.mxu0 0.0
      %606 = vmatprep.subr.mxu0 0.0
      %607 = vmatpush1.msra.mxu0 0.0
      %608 = vmatprep.subr.mxu0 0.0
      %609 = vmatpush1.msra.mxu0 0.0
      %610 = vmatprep.subr.mxu0 0.0
      %611 = vmatpush1.msra.mxu0 0.0
      %612 = vmatprep.subr.mxu0 0.0
      %613 = vmatpush1.msra.mxu0 0.0
      %614 = vmatprep.subr.mxu0 0.0
      %615 = vmatpush1.msra.mxu0 0.0
      %616 = vmatprep.subr.mxu0 0.0
      %617 = vmatpush1.msra.mxu0 0.0
      %618 = vmatprep.subr.mxu0 0.0
      %619 = vmatpush1.msra.mxu0 0.0
      %620 = vmatprep.subr.mxu0 0.0
      %621 = vmatpush1.msra.mxu0 0.0
      %622 = vmatprep.subr.mxu0 0.0
      %623 = vmatpush1.msra.mxu0 0.0
      %624 = vmatprep.subr.mxu0 0.0
      %625 = vmatpush1.msra.mxu0 0.0
      %626 = vmatprep.subr.mxu0 0.0
      %627 = vmatpush1.msra.mxu0 0.0
      %628 = vmatprep.mubr.f32.mxu0 0.0
      %629 = vmatmul.mubr.f32.gmra.mrb[0].mxu0 %v545
      %v630 = vpop.f32.mrb[0].mxu0
      %v631 = vadd.f32 0.0, %v630
      %v632 = vpop.f32.mrb[0].mxu0
      %633 = vmatprep.mubr.f32.mxu0 0.0
      %634 = vmatmul.mubr.f32.gmra.mrb[0].mxu0 %v546
      %v635 = vpop.f32.mrb[0].mxu0
      %v636 = vadd.f32 0.0, %v635
      %v637 = vpop.f32.mrb[0].mxu0
      %638 = vdwg.mxu0
      %639 = vmatprep.subr.mxu0 0.0
      %640 = vmatpush1.msra.mxu0 %v529
      %641 = vmatprep.subr.mxu0 0.0
      %642 = vmatpush1.msra.mxu0 %v530
      %643 = vmatprep.subr.mxu0 0.0
      %644 = vmatpush1.msra.mxu0 %v531
      %645 = vmatprep.subr.mxu0 0.0
      %646 = vmatpush1.msra.mxu0 %v532
      %647 = vmatprep.subr.mxu0 0.0
      %648 = vmatpush1.msra.mxu0 %v533
      %649 = vmatprep.subr.mxu0 0.0
      %650 = vmatpush1.msra.mxu0 %v534
      %651 = vmatprep.subr.mxu0 0.0
      %652 = vmatpush1.msra.mxu0 %v535
      %653 = vmatprep.subr.mxu0 0.0
      %654 = vmatpush1.msra.mxu0 %v536
      %655 = vmatprep.subr.mxu0 0.0
      %656 = vmatpush1.msra.mxu0 %v537
      %657 = vmatprep.subr.mxu0 0.0
      %658 = vmatpush1.msra.mxu0 %v538
      %659 = vmatprep.subr.mxu0 0.0
      %660 = vmatpush1.msra.mxu0 %v539
      %661 = vmatprep.subr.mxu0 0.0
      %662 = vmatpush1.msra.mxu0 %v540
      %663 = vmatprep.subr.mxu0 0.0
      %664 = vmatpush1.msra.mxu0 %v541
      %665 = vmatprep.subr.mxu0 0.0
      %666 = vmatpush1.msra.mxu0 %v542
      %667 = vmatprep.subr.mxu0 0.0
      %668 = vmatpush1.msra.mxu0 %v543
      %669 = vmatprep.subr.mxu0 0.0
      %670 = vmatpush1.msra.mxu0 %v544
      %671 = vmatprep.subr.mxu0 0.0
      %672 = vmatpush1.msra.mxu0 0.0
      %673 = vmatprep.subr.mxu0 0.0
      %674 = vmatpush1.msra.mxu0 0.0
      %675 = vmatprep.subr.mxu0 0.0
      %676 = vmatpush1.msra.mxu0 0.0
      %677 = vmatprep.subr.mxu0 0.0
      %678 = vmatpush1.msra.mxu0 0.0
      %679 = vmatprep.subr.mxu0 0.0
      %680 = vmatpush1.msra.mxu0 0.0
      %681 = vmatprep.subr.mxu0 0.0
      %682 = vmatpush1.msra.mxu0 0.0
      %683 = vmatprep.subr.mxu0 0.0
      %684 = vmatpush1.msra.mxu0 0.0
      %685 = vmatprep.subr.mxu0 0.0
      %686 = vmatpush1.msra.mxu0 0.0
      %687 = vmatprep.subr.mxu0 0.0
      %688 = vmatpush1.msra.mxu0 0.0
      %689 = vmatprep.subr.mxu0 0.0
      %690 = vmatpush1.msra.mxu0 0.0
      %691 = vmatprep.subr.mxu0 0.0
      %692 = vmatpush1.msra.mxu0 0.0
      %693 = vmatprep.subr.mxu0 0.0
      %694 = vmatpush1.msra.mxu0 0.0
      %695 = vmatprep.subr.mxu0 0.0
      %696 = vmatpush1.msra.mxu0 0.0
      %697 = vmatprep.subr.mxu0 0.0
      %698 = vmatpush1.msra.mxu0 0.0
      %699 = vmatprep.subr.mxu0 0.0
      %700 = vmatpush1.msra.mxu0 0.0
      %701 = vmatprep.subr.mxu0 0.0
      %702 = vmatpush1.msra.mxu0 0.0
      %703 = vmatprep.mubr.f32.mxu0 0.0
      %704 = vmatmul.mubr.f32.gmra.mrb[0].mxu0 %v527
      %v705 = vpop.f32.mrb[0].mxu0
      %v706 = vadd.f32 %v631, %v705
      %v707 = vpop.f32.mrb[0].mxu0
      %708 = vmatprep.mubr.f32.mxu0 0.0
      %709 = vmatmul.mubr.f32.gmra.mrb[0].mxu0 %v528
      %v710 = vpop.f32.mrb[0].mxu0
      %v711 = vadd.f32 %v636, %v710
      %v712 = vpop.f32.mrb[0].mxu0
      %713 = vdwg.mxu0
      %v714 = vld [vmem:[#allocation3 + $0x2] sm:$0xff]
      %v715 = vld [vmem:[#allocation3 + $0xa] sm:$0xff]
      %s716 = scalar_lea.vmem %s3, 256
      %v717 = vld [vmem:[%s716] sm:$0xff]
      %v718 = vld [vmem:[%s716 + $0x8] sm:$0xff]
      %v719 = vld [vmem:[%s716 + $0x10] sm:$0xff]
      %v720 = vld [vmem:[%s716 + $0x18] sm:$0xff]
      %v721 = vld [vmem:[%s716 + $0x20] sm:$0xff]
      %v722 = vld [vmem:[%s716 + $0x28] sm:$0xff]
      %v723 = vld [vmem:[%s716 + $0x30] sm:$0xff]
      %v724 = vld [vmem:[%s716 + $0x38] sm:$0xff]
      %v725 = vld [vmem:[%s716 + $0x40] sm:$0xff]
      %v726 = vld [vmem:[%s716 + $0x48] sm:$0xff]
      %v727 = vld [vmem:[%s716 + $0x50] sm:$0xff]
      %v728 = vld [vmem:[%s716 + $0x58] sm:$0xff]
      %v729 = vld [vmem:[%s716 + $0x60] sm:$0xff]
      %v730 = vld [vmem:[%s716 + $0x68] sm:$0xff]
      %v731 = vld [vmem:[%s716 + $0x70] sm:$0xff]
      %v732 = vld [vmem:[%s716 + $0x78] sm:$0xff]
      %733 = vmatprep.subr.mxu0 0.0
      %734 = vmatpush1.msra.mxu0 %v717
      %735 = vmatprep.subr.mxu0 0.0
      %736 = vmatpush1.msra.mxu0 %v718
      %737 = vmatprep.subr.mxu0 0.0
      %738 = vmatpush1.msra.mxu0 %v719
      %739 = vmatprep.subr.mxu0 0.0
      %740 = vmatpush1.msra.mxu0 %v720
      %741 = vmatprep.subr.mxu0 0.0
      %742 = vmatpush1.msra.mxu0 %v721
      %743 = vmatprep.subr.mxu0 0.0
      %744 = vmatpush1.msra.mxu0 %v722
      %745 = vmatprep.subr.mxu0 0.0
      %746 = vmatpush1.msra.mxu0 %v723
      %747 = vmatprep.subr.mxu0 0.0
      %748 = vmatpush1.msra.mxu0 %v724
      %749 = vmatprep.subr.mxu0 0.0
      %750 = vmatpush1.msra.mxu0 %v725
      %751 = vmatprep.subr.mxu0 0.0
      %752 = vmatpush1.msra.mxu0 %v726
      %753 = vmatprep.subr.mxu0 0.0
      %754 = vmatpush1.msra.mxu0 %v727
      %755 = vmatprep.subr.mxu0 0.0
      %756 = vmatpush1.msra.mxu0 %v728
      %757 = vmatprep.subr.mxu0 0.0
      %758 = vmatpush1.msra.mxu0 %v729
      %759 = vmatprep.subr.mxu0 0.0
      %760 = vmatpush1.msra.mxu0 %v730
      %761 = vmatprep.subr.mxu0 0.0
      %762 = vmatpush1.msra.mxu0 %v731
      %763 = vmatprep.subr.mxu0 0.0
      %764 = vmatpush1.msra.mxu0 %v732
      %765 = vmatprep.subr.mxu0 0.0
      %766 = vmatpush1.msra.mxu0 0.0
      %767 = vmatprep.subr.mxu0 0.0
      %768 = vmatpush1.msra.mxu0 0.0
      %769 = vmatprep.subr.mxu0 0.0
      %770 = vmatpush1.msra.mxu0 0.0
      %771 = vmatprep.subr.mxu0 0.0
      %772 = vmatpush1.msra.mxu0 0.0
      %773 = vmatprep.subr.mxu0 0.0
      %774 = vmatpush1.msra.mxu0 0.0
      %775 = vmatprep.subr.mxu0 0.0
      %776 = vmatpush1.msra.mxu0 0.0
      %777 = vmatprep.subr.mxu0 0.0
      %778 = vmatpush1.msra.mxu0 0.0
      %779 = vmatprep.subr.mxu0 0.0
      %780 = vmatpush1.msra.mxu0 0.0
      %781 = vmatprep.subr.mxu0 0.0
      %782 = vmatpush1.msra.mxu0 0.0
      %783 = vmatprep.subr.mxu0 0.0
      %784 = vmatpush1.msra.mxu0 0.0
      %785 = vmatprep.subr.mxu0 0.0
      %786 = vmatpush1.msra.mxu0 0.0
      %787 = vmatprep.subr.mxu0 0.0
      %788 = vmatpush1.msra.mxu0 0.0
      %789 = vmatprep.subr.mxu0 0.0
      %790 = vmatpush1.msra.mxu0 0.0
      %791 = vmatprep.subr.mxu0 0.0
      %792 = vmatpush1.msra.mxu0 0.0
      %793 = vmatprep.subr.mxu0 0.0
      %794 = vmatpush1.msra.mxu0 0.0
      %795 = vmatprep.subr.mxu0 0.0
      %796 = vmatpush1.msra.mxu0 0.0
      %797 = vmatprep.mubr.f32.mxu0 0.0
      %798 = vmatmul.mubr.f32.gmra.mrb[0].mxu0 %v714
      %v799 = vpop.f32.mrb[0].mxu0
      %v800 = vadd.f32 0.0, %v799
      %v801 = vpop.f32.mrb[0].mxu0
      %802 = vmatprep.mubr.f32.mxu0 0.0
      %803 = vmatmul.mubr.f32.gmra.mrb[0].mxu0 %v715
      %v804 = vpop.f32.mrb[0].mxu0
      %v805 = vadd.f32 0.0, %v804
      %v806 = vpop.f32.mrb[0].mxu0
      %807 = vdwg.mxu0
      %v808 = vadd.f32 %v706, %v800
      %v809 = vadd.f32 %v711, %v805
      %v810 = vld [vmem:[%s4] sm:$0x1]
      %v812 = vlaneseq
      %v813 = vshrl.u32 %v812, 7
      %v814 = vsub.s32 0, %v813
      %v815 = vrot.slane %v810, %v814
      %v817 = vadd.f32 %v808, %v815
      %v818 = vadd.f32 %v809, %v815
      %v819 = vmax.f32 %v817, 0.0
      %v820 = vmax.f32 %v818, 0.0
      %821 = vst [vmem:[%s224] sm:$0xff] %v819
      %822 = vst [vmem:[%s224 + $0x8] sm:$0xff] %v820
      %p823 = scmp.lt.s32.totalorder %s16, 1
      %s824 = scalar_select %p823, %s16, 1
      %s825 = smul.addr %s824, 2
      %s826 = smul.addr %s825, 8
      %s827 = scalar_lea.vmem %s5, %s826
      // Predicated region
      $region41: #{model_wrapper_nohead_forward.1} parent=39 // pred_check
        %p828 = pneg %p144
      $region42: #{model_wrapper_nohead_forward.1} parent=39 // pred_check_branch
        %830 = sbr.rel (%p828) target = $region44
      $region43: #{model_wrapper_nohead_forward.1} parent=39 // pred_region
        _
      $region44: #{model_wrapper_nohead_forward.1} parent=39 // pred_fallthru
        _
    $region40: #{model_wrapper_nohead_forward.1} parent=5 // pred_fallthru
      _
    %p831 = scmp.le.s32.totalorder 2, %s11
    // Predicated region
    $region45: #{model_wrapper_nohead_forward.1} parent=5 // pred_check
      %p832 = pneg %p831
    $region46: #{model_wrapper_nohead_forward.1} parent=5 // pred_check_branch
      %834 = sbr.rel (%p832) target = $region48
    $region47: #{model_wrapper_nohead_forward.1} parent=5 // pred_region
      %s835 = ssub.s32 %s11, 2
      // Predicated region
      $region49: #{model_wrapper_nohead_forward.1} parent=47 // pred_check
        %p836 = pneg %p150
      $region50: #{model_wrapper_nohead_forward.1} parent=47 // pred_check_branch
        %838 = sbr.rel (%p836) target = $region52
      $region51: #{model_wrapper_nohead_forward.1} parent=47 // pred_region
        %p839 = scmp.lt.s32.totalorder %s17, 1
        %s840 = scalar_select %p839, %s17, 1
        %s841 = smul.addr %s840, 2
        %s842 = smul.addr %s841, 8
        %s843 = scalar_lea.vmem %s5, %s842
      $region52: #{model_wrapper_nohead_forward.1} parent=47 // pred_fallthru
        _
    $region48: #{model_wrapper_nohead_forward.1} parent=5 // pred_fallthru
      _
  $region6: #{model_wrapper_nohead_forward.1} parent=0 // loop_footer
    %s15 = sadd.s32 1, %s11
  $region7: #{model_wrapper_nohead_forward.1} parent=0 // loop_footer_branch
    %10 = sbr.rel target = $region3
  $region8: #{model_wrapper_nohead_forward.1} parent=0 // loop_exit
    _

</llo_original>
